<compile_context>
chip_gen: v7x
topology: tpu7x:2x2x1
jax: 0.10.0
libtpu: 0.0.40
codegen_flags: <defaults>
</compile_context>

<pallas_src>
import functools

import jax
import jax.numpy as jnp
from jax.experimental import pallas as pl
from jax.experimental.pallas import tpu as pltpu

IN_DIM = 24
HID = 256
OUT_DIM = 4
OUT_PAD = 128           # lane-dense padded output width
MAX_TILE_B = 1024       # raised per review (footprint is tiny vs. VMEM)


def munet1_kernel(x_ref, w1_ref, b1_ref, w2_ref, b2_ref, w3_ref, b3_ref, o_ref):
    # In-kernel f32 -> bf16 cast of the activations (VPU work hidden under MXU).
    x = x_ref[...].astype(jnp.bfloat16)
    # fc1 + relu   (bf16 operands, f32 accumulate on the MXU)
    h1 = jnp.dot(x, w1_ref[...], preferred_element_type=jnp.float32)
    h1 = jnp.maximum(h1 + b1_ref[...], 0.0).astype(jnp.bfloat16)
    # fc2 + relu
    h2 = jnp.dot(h1, w2_ref[...], preferred_element_type=jnp.float32)
    h2 = jnp.maximum(h2 + b2_ref[...], 0.0).astype(jnp.bfloat16)
    # fc_mu + tanh (lane-dense, padded to 128 output columns); tanh in f32 for
    # accuracy, store as bf16 (tanh-bounded head) to halve output HBM traffic.
    mu = jnp.dot(h2, w3_ref[...], preferred_element_type=jnp.float32)
    o_ref[...] = jnp.tanh(mu + b3_ref[...]).astype(o_ref.dtype)


def prepare_params(params):
    """Hoisted, one-time param prep: transpose (out,in)->(in,out), cast to bf16,
    and zero-pad the fc_mu layer to 128 lane-dense output columns."""
    w1 = params["fc1_w"].T.astype(jnp.bfloat16)                    # (24, 256)
    b1 = params["fc1_b"][None, :].astype(jnp.float32)              # (1, 256)
    w2 = params["fc2_w"].T.astype(jnp.bfloat16)                    # (256, 256)
    b2 = params["fc2_b"][None, :].astype(jnp.float32)              # (1, 256)
    w3 = jnp.zeros((HID, OUT_PAD), jnp.bfloat16).at[:, :OUT_DIM].set(
        params["fc_mu_w"].T.astype(jnp.bfloat16))                  # (256, 128)
    b3 = jnp.zeros((1, OUT_PAD), jnp.float32).at[:, :OUT_DIM].set(
        params["fc_mu_b"].astype(jnp.float32))                     # (1, 128)
    return (w1, b1, w2, b2, w3, b3)


def _round_up(a, m):
    return ((a + m - 1) // m) * m


@jax.jit
def munet1_forward(x, prepped):
    """x: (B, 24) float32. prepped: output of prepare_params(). Returns (B, 4) f32."""
    w1, b1, w2, b2, w3, b3 = prepped
    B = x.shape[0]

    # Batch tile: multiple of 16 sublanes (bf16 packing), capped at MAX_TILE_B.
    tile_b = min(MAX_TILE_B, _round_up(B, 16))
    pad_b = _round_up(B, tile_b)
    if pad_b != B:
        x = jnp.pad(x, ((0, pad_b - B), (0, 0)))   # row pad only; stays f32

    n_steps = pad_b // tile_b
    grid = (n_steps,)
    const = lambda i: (0, 0)  # weights/biases pinned in VMEM across grid steps
    once = pl.Buffered(1)     # DMA'd once; no point double-buffering them

    # Shard the batch grid across TensorCores on v7x when there is enough work;
    # a 1-step grid stays "arbitrary" (no-op on 1-TC v5e/v6e either way).
    dim_sem = (pltpu.CORE_PARALLEL,) if n_steps >= 2 else (pltpu.ARBITRARY,)

    flops = 2 * pad_b * (IN_DIM * HID + HID * HID + HID * OUT_PAD)
    bytes_accessed = (
        (w1.size + w2.size + w3.size) * 2                 # bf16 weights
        + (b1.size + b2.size + b3.size) * 4                # f32 biases
        + pad_b * IN_DIM * 4                               # f32 x read
        + pad_b * OUT_PAD * 2                              # bf16 padded output write
    )

    out = pl.pallas_call(
        munet1_kernel,
        out_shape=jax.ShapeDtypeStruct((pad_b, OUT_PAD), jnp.bfloat16),
        grid_spec=pltpu.PrefetchScalarGridSpec(
            num_scalar_prefetch=0,
            grid=grid,
            in_specs=[
                pl.BlockSpec((tile_b, IN_DIM), lambda i: (i, 0)),          # x tile (f32)
                pl.BlockSpec((IN_DIM, HID), const, pipeline_mode=once),    # w1
                pl.BlockSpec((1, HID), const, pipeline_mode=once),         # b1
                pl.BlockSpec((HID, HID), const, pipeline_mode=once),       # w2
                pl.BlockSpec((1, HID), const, pipeline_mode=once),         # b2
                pl.BlockSpec((HID, OUT_PAD), const, pipeline_mode=once),   # w3 (padded)
                pl.BlockSpec((1, OUT_PAD), const, pipeline_mode=once),     # b3 (padded)
            ],
            out_specs=pl.BlockSpec((tile_b, OUT_PAD), lambda i: (i, 0)),
        ),
        compiler_params=pltpu.CompilerParams(
            dimension_semantics=dim_sem,
            vmem_limit_bytes=32 * 1024 * 1024,   # above v5e's 16 MiB scoped default
        ),
        cost_estimate=pl.CostEstimate(
            flops=flops,
            transcendentals=pad_b * OUT_PAD,     # tanh runs on all padded lanes
            bytes_accessed=bytes_accessed,
        ),
    )(x, w1, b1, w2, b2, w3, b3)

    return out[:B, :OUT_DIM].astype(jnp.float32)


def init_params(key):
    """Deterministic synthetic params matching nn.Linear shapes (out, in)."""
    ks = jax.random.split(key, 6)

    def lin(kw, kb, fan_in, fan_out):
        bound = 1.0 / jnp.sqrt(fan_in)
        w = jax.random.uniform(kw, (fan_out, fan_in), jnp.float32, -bound, bound)
        b = jax.random.uniform(kb, (fan_out,), jnp.float32, -bound, bound)
        return w, b

    fc1_w, fc1_b = lin(ks[0], ks[1], IN_DIM, HID)
    fc2_w, fc2_b = lin(ks[2], ks[3], HID, HID)
    fcm_w, fcm_b = lin(ks[4], ks[5], HID, OUT_DIM)
    return {
        "fc1_w": fc1_w, "fc1_b": fc1_b,
        "fc2_w": fc2_w, "fc2_b": fc2_b,
        "fc_mu_w": fcm_w, "fc_mu_b": fcm_b,
    }


def reference_forward(x, p):
    h1 = jnp.maximum(x @ p["fc1_w"].T + p["fc1_b"], 0.0)
    h2 = jnp.maximum(h1 @ p["fc2_w"].T + p["fc2_b"], 0.0)
    return jnp.tanh(h2 @ p["fc_mu_w"].T + p["fc_mu_b"])


if __name__ == "__main__":
    key = jax.random.PRNGKey(0)
    kx, kp = jax.random.split(key)
    params = init_params(kp)
    prepped = prepare_params(params)          # one-time transpose/cast/pad
    x = jax.random.normal(kx, (2, IN_DIM), jnp.float32)  # batch=2, state_dim=24

    mu = munet1_forward(x, prepped)
    jax.block_until_ready(mu)

    ref = reference_forward(x, params)
    assert mu.shape == (2, OUT_DIM)
    # bf16 weights/activations/output -> looser tolerance than f32
    # (tanh-bounded head keeps the absolute error small).
    assert jnp.allclose(mu, ref, atol=2e-2, rtol=2e-2), (
        f"max abs err {jnp.max(jnp.abs(mu - ref))}")
    print("KERNEL_OK")
</pallas_src>

<mosaic_0001>
module attributes {stable_mosaic.version = 11 : i64} {
  func.func @munet1_kernel(%arg0: i32, %arg1: memref<16x24xf32, #tpu.memory_space<vmem>>, %arg2: memref<24x256xbf16, #tpu.memory_space<vmem>>, %arg3: memref<1x256xf32, #tpu.memory_space<vmem>>, %arg4: memref<256x256xbf16, #tpu.memory_space<vmem>>, %arg5: memref<1x256xf32, #tpu.memory_space<vmem>>, %arg6: memref<256x128xbf16, #tpu.memory_space<vmem>>, %arg7: memref<1x128xf32, #tpu.memory_space<vmem>>, %arg8: memref<16x128xbf16, #tpu.memory_space<vmem>>) attributes {dimension_semantics = [#tpu.dimension_semantics<arbitrary>], iteration_bounds = array<i64: 1>, scalar_prefetch = 0 : i64, scratch_operands = 0 : i64, tpu.core_type = #tpu.core_type<tc>, window_params = [{transform_indices = @transform_0, window_bounds = array<i64: 16, 24>}, {pipeline_mode = #tpu.pipeline_mode<synchronous>, transform_indices = @transform_1, window_bounds = array<i64: 24, 256>}, {pipeline_mode = #tpu.pipeline_mode<synchronous>, transform_indices = @transform_2, window_bounds = array<i64: 1, 256>}, {pipeline_mode = #tpu.pipeline_mode<synchronous>, transform_indices = @transform_3, window_bounds = array<i64: 256, 256>}, {pipeline_mode = #tpu.pipeline_mode<synchronous>, transform_indices = @transform_4, window_bounds = array<i64: 1, 256>}, {pipeline_mode = #tpu.pipeline_mode<synchronous>, transform_indices = @transform_5, window_bounds = array<i64: 256, 128>}, {pipeline_mode = #tpu.pipeline_mode<synchronous>, transform_indices = @transform_6, window_bounds = array<i64: 1, 128>}, {transform_indices = @transform_7, window_bounds = array<i64: 16, 128>}]} {
    %c0 = arith.constant 0 : index
    %c0_0 = arith.constant 0 : index
    %0 = vector.load %arg1[%c0, %c0_0] : memref<16x24xf32, #tpu.memory_space<vmem>>, vector<16x24xf32>
    %1 = arith.truncf %0 : vector<16x24xf32> to vector<16x24xbf16>
    %c0_1 = arith.constant 0 : index
    %c0_2 = arith.constant 0 : index
    %2 = vector.load %arg2[%c0_1, %c0_2] : memref<24x256xbf16, #tpu.memory_space<vmem>>, vector<24x256xbf16>
    %cst = arith.constant dense<0.000000e+00> : vector<16x256xf32>
    %3 = tpu.matmul %1, %2, %cst {dimension_numbers = #tpu.dot_dimension_numbers<[1], [0], [0], [1], [0, 0, 1, 1], [], []>} : vector<16x24xbf16>, vector<24x256xbf16>, vector<16x256xf32> -> vector<16x256xf32>
    %c0_3 = arith.constant 0 : index
    %c0_4 = arith.constant 0 : index
    %4 = vector.load %arg3[%c0_3, %c0_4] : memref<1x256xf32, #tpu.memory_space<vmem>>, vector<1x256xf32>
    %5 = vector.broadcast %4 : vector<1x256xf32> to vector<16x256xf32>
    %6 = arith.addf %3, %5 : vector<16x256xf32>
    %cst_5 = arith.constant 0.000000e+00 : f32
    %7 = vector.broadcast %cst_5 : f32 to vector<16x256xf32>
    %8 = arith.maximumf %6, %7 : vector<16x256xf32>
    %9 = arith.truncf %8 : vector<16x256xf32> to vector<16x256xbf16>
    %c0_6 = arith.constant 0 : index
    %c0_7 = arith.constant 0 : index
    %10 = vector.load %arg4[%c0_6, %c0_7] : memref<256x256xbf16, #tpu.memory_space<vmem>>, vector<256x256xbf16>
    %cst_8 = arith.constant dense<0.000000e+00> : vector<16x256xf32>
    %11 = tpu.matmul %9, %10, %cst_8 {dimension_numbers = #tpu.dot_dimension_numbers<[1], [0], [0], [1], [0, 0, 1, 1], [], []>} : vector<16x256xbf16>, vector<256x256xbf16>, vector<16x256xf32> -> vector<16x256xf32>
    %c0_9 = arith.constant 0 : index
    %c0_10 = arith.constant 0 : index
    %12 = vector.load %arg5[%c0_9, %c0_10] : memref<1x256xf32, #tpu.memory_space<vmem>>, vector<1x256xf32>
    %13 = vector.broadcast %12 : vector<1x256xf32> to vector<16x256xf32>
    %14 = arith.addf %11, %13 : vector<16x256xf32>
    %cst_11 = arith.constant 0.000000e+00 : f32
    %15 = vector.broadcast %cst_11 : f32 to vector<16x256xf32>
    %16 = arith.maximumf %14, %15 : vector<16x256xf32>
    %17 = arith.truncf %16 : vector<16x256xf32> to vector<16x256xbf16>
    %c0_12 = arith.constant 0 : index
    %c0_13 = arith.constant 0 : index
    %18 = vector.load %arg6[%c0_12, %c0_13] : memref<256x128xbf16, #tpu.memory_space<vmem>>, vector<256x128xbf16>
    %cst_14 = arith.constant dense<0.000000e+00> : vector<16x128xf32>
    %19 = tpu.matmul %17, %18, %cst_14 {dimension_numbers = #tpu.dot_dimension_numbers<[1], [0], [0], [1], [0, 0, 1, 1], [], []>} : vector<16x256xbf16>, vector<256x128xbf16>, vector<16x128xf32> -> vector<16x128xf32>
    %c0_15 = arith.constant 0 : index
    %c0_16 = arith.constant 0 : index
    %20 = vector.load %arg7[%c0_15, %c0_16] : memref<1x128xf32, #tpu.memory_space<vmem>>, vector<1x128xf32>
    %21 = vector.broadcast %20 : vector<1x128xf32> to vector<16x128xf32>
    %22 = arith.addf %19, %21 : vector<16x128xf32>
    %23 = math.tanh %22 : vector<16x128xf32>
    %24 = arith.truncf %23 : vector<16x128xf32> to vector<16x128xbf16>
    %c0_17 = arith.constant 0 : index
    %c0_18 = arith.constant 0 : index
    %25 = vector.load %arg8[%c0_17, %c0_18] : memref<16x128xbf16, #tpu.memory_space<vmem>>, vector<16x128xbf16>
    tpu.vector_store %arg8[%c0_17, %c0_18], %24 {strides = array<i32>} : memref<16x128xbf16, #tpu.memory_space<vmem>>, vector<16x128xbf16>,
    return
  }
  func.func @transform_0(%arg0: i32) -> (i32, i32) {
    %c0_i32 = arith.constant 0 : i32
    %c0_i32_0 = arith.constant 0 : i32
    return %arg0, %c0_i32 : i32, i32
  }
  func.func @transform_1(%arg0: i32) -> (i32, i32) {
    %c0_i32 = arith.constant 0 : i32
    %c0_i32_0 = arith.constant 0 : i32
    %c0_i32_1 = arith.constant 0 : i32
    return %c0_i32, %c0_i32_0 : i32, i32
  }
  func.func @transform_2(%arg0: i32) -> (i32, i32) {
    %c0_i32 = arith.constant 0 : i32
    %c0_i32_0 = arith.constant 0 : i32
    %c0_i32_1 = arith.constant 0 : i32
    return %c0_i32, %c0_i32_0 : i32, i32
  }
  func.func @transform_3(%arg0: i32) -> (i32, i32) {
    %c0_i32 = arith.constant 0 : i32
    %c0_i32_0 = arith.constant 0 : i32
    %c0_i32_1 = arith.constant 0 : i32
    return %c0_i32, %c0_i32_0 : i32, i32
  }
  func.func @transform_4(%arg0: i32) -> (i32, i32) {
    %c0_i32 = arith.constant 0 : i32
    %c0_i32_0 = arith.constant 0 : i32
    %c0_i32_1 = arith.constant 0 : i32
    return %c0_i32, %c0_i32_0 : i32, i32
  }
  func.func @transform_5(%arg0: i32) -> (i32, i32) {
    %c0_i32 = arith.constant 0 : i32
    %c0_i32_0 = arith.constant 0 : i32
    %c0_i32_1 = arith.constant 0 : i32
    return %c0_i32, %c0_i32_0 : i32, i32
  }
  func.func @transform_6(%arg0: i32) -> (i32, i32) {
    %c0_i32 = arith.constant 0 : i32
    %c0_i32_0 = arith.constant 0 : i32
    %c0_i32_1 = arith.constant 0 : i32
    return %c0_i32, %c0_i32_0 : i32, i32
  }
  func.func @transform_7(%arg0: i32) -> (i32, i32) {
    %c0_i32 = arith.constant 0 : i32
    %c0_i32_0 = arith.constant 0 : i32
    return %arg0, %c0_i32 : i32, i32
  }
}

</mosaic_0001>

<llo_original>
// kernel: munet1_forward.1
$region0: #{munet1_forward.1}
  #allocation0 [shape = 'u32[]', space=smem, size = 0x4, offset = 0x4, fixed_abs, tag = 'smem constant byte address 0x4 - core index']
  #allocation1 [shape = 'u32[144,128]{1,0:T(1,128)}', space=vmem, size = 0x12000, scoped, tag = 'internal scratch']
  %s0 = inlined_call_operand.vmem [shape: f32[16,24], index: 0, kind: input, shape index: {}]
  %s1 = inlined_call_operand.hbm [shape: bf16[24,256], index: 1, kind: input, shape index: {}]
  %s2 = inlined_call_operand.vmem [shape: f32[1,256], index: 2, kind: input, shape index: {}]
  %s3 = inlined_call_operand.hbm [shape: bf16[256,256], index: 3, kind: input, shape index: {}]
  %s4 = inlined_call_operand.vmem [shape: f32[1,256], index: 4, kind: input, shape index: {}]
  %s5 = inlined_call_operand.hbm [shape: bf16[256,128], index: 5, kind: input, shape index: {}]
  %s6 = inlined_call_operand.vmem [shape: f32[1,128], index: 6, kind: input, shape index: {}]
  %s7 = inlined_call_operand.vmem [shape: bf16[16,128], index: 7, kind: output, shape index: {}]
  %s8 = sld [smem:[#allocation0]]
  $region50: #{munet1_forward.1} parent=0
    _
  %s10 = ssub.s32 1, %s8
  %s11 = scalar_select 0, %s10, %s8
  $region1: #{munet1_forward.1} parent=0
    #allocation2 [shape = 'u8[12288]{0}', space=vmem, size = 0x3000, scoped, tag = 'input window, operand 1, single buffered']
    #allocation3 [shape = 's32[1]{0}', space=sflag, size = 0x4, scoped, tag = 'scoped memory for munet1_forward.1']
    #allocation4 [shape = 'u8[131072]{0}', space=vmem, size = 0x20000, scoped, tag = 'input window, operand 3, single buffered']
    #allocation5 [shape = 's32[1]{0}', space=sflag, size = 0x4, scoped, tag = 'scoped memory for munet1_forward.1']
    #allocation6 [shape = 'u8[65536]{0}', space=vmem, size = 0x10000, scoped, tag = 'input window, operand 5, single buffered']
    %12 = vsyncpa [#allocation3], 0
    %13 = vsyncpa [#allocation5], 0
    // Predicated region
    $region2: #{munet1_forward.1} parent=1 // pred_check
      _
    $region3: #{munet1_forward.1} parent=1 // pred_check_branch
      %15 = sbr.rel (0) target = $region5
    $region4: #{munet1_forward.1} parent=1 // pred_region
      _
    $region5: #{munet1_forward.1} parent=1 // pred_fallthru
      _
    // Predicated region
    $region6: #{munet1_forward.1} parent=1 // pred_check
      _
    $region7: #{munet1_forward.1} parent=1 // pred_check_branch
      %17 = sbr.rel (0) target = $region9
    $region8: #{munet1_forward.1} parent=1 // pred_region
      %s19 = ssub.s32 384, 384
      %20 = vsyncadd [#allocation3], %s19
      %s21 = sshll.u32 [#allocation2], 4
      %s22 = int_to_ptr.vmem [resolvable:$true] %s21
      %27 = dma.hbm_to_vmem [thread:$0]  %s1, 384, %s22, [#allocation3], 128, 128, 8
    $region9: #{munet1_forward.1} parent=1 // pred_fallthru
      _
    // Predicated region
    $region10: #{munet1_forward.1} parent=1 // pred_check
      _
    $region11: #{munet1_forward.1} parent=1 // pred_check_branch
      %29 = sbr.rel (0) target = $region13
    $region12: #{munet1_forward.1} parent=1 // pred_region
      _
    $region13: #{munet1_forward.1} parent=1 // pred_fallthru
      _
    // Predicated region
    $region14: #{munet1_forward.1} parent=1 // pred_check
      _
    $region15: #{munet1_forward.1} parent=1 // pred_check_branch
      %31 = sbr.rel (0) target = $region17
    $region16: #{munet1_forward.1} parent=1 // pred_region
      %s33 = ssub.s32 4096, 4096
      %34 = vsyncadd [#allocation5], %s33
      %s35 = sshll.u32 [#allocation4], 4
      %s36 = int_to_ptr.vmem [resolvable:$true] %s35
      %41 = dma.hbm_to_vmem [thread:$0]  %s3, 4096, %s36, [#allocation5], 128, 128, 8
    $region17: #{munet1_forward.1} parent=1 // pred_fallthru
      _
    // Predicated region
    $region18: #{munet1_forward.1} parent=1 // pred_check
      _
    $region19: #{munet1_forward.1} parent=1 // pred_check_branch
      %43 = sbr.rel (0) target = $region21
    $region20: #{munet1_forward.1} parent=1 // pred_region
      _
    $region21: #{munet1_forward.1} parent=1 // pred_fallthru
      _
    // Predicated region
    $region22: #{munet1_forward.1} parent=1 // pred_check
      _
    $region23: #{munet1_forward.1} parent=1 // pred_check_branch
      %45 = sbr.rel (0) target = $region25
    $region24: #{munet1_forward.1} parent=1 // pred_region
      %s47 = ssub.s32 2048, 2048
      %48 = vsyncadd [#allocation5], %s47
      %s49 = sshll.u32 [#allocation6], 4
      %s50 = int_to_ptr.vmem [resolvable:$true] %s49
      %55 = dma.hbm_to_vmem [thread:$0]  %s5, 2048, %s50, [#allocation5], 64, 64, 4
    $region25: #{munet1_forward.1} parent=1 // pred_fallthru
      _
    // Predicated region
    $region26: #{munet1_forward.1} parent=1 // pred_check
      _
    $region27: #{munet1_forward.1} parent=1 // pred_check_branch
      %57 = sbr.rel (0) target = $region29
    $region28: #{munet1_forward.1} parent=1 // pred_region
      _
    $region29: #{munet1_forward.1} parent=1 // pred_fallthru
      _
    // Predicated region
    $region30: #{munet1_forward.1} parent=1 // pred_check
      _
    $region31: #{munet1_forward.1} parent=1 // pred_check_branch
      %59 = sbr.rel (0) target = $region33
    $region32: #{munet1_forward.1} parent=1 // pred_region
      %60 = dma.done [#allocation3], 384
    $region33: #{munet1_forward.1} parent=1 // pred_fallthru
      _
    // Predicated region
    $region34: #{munet1_forward.1} parent=1 // pred_check
      _
    $region35: #{munet1_forward.1} parent=1 // pred_check_branch
      %62 = sbr.rel (0) target = $region37
    $region36: #{munet1_forward.1} parent=1 // pred_region
      %63 = dma.done [#allocation5], 4096
    $region37: #{munet1_forward.1} parent=1 // pred_fallthru
      _
    // Predicated region
    $region38: #{munet1_forward.1} parent=1 // pred_check
      _
    $region39: #{munet1_forward.1} parent=1 // pred_check_branch
      %65 = sbr.rel (0) target = $region41
    $region40: #{munet1_forward.1} parent=1 // pred_region
      %66 = dma.done [#allocation5], 2048
    $region41: #{munet1_forward.1} parent=1 // pred_fallthru
      _
    %v68 = vld [vmem:[%s0] sm:$0xff]
    %v69 = vld [vmem:[%s0 + $0x8] sm:$0xff]
    %v70 = vpack.c.bf16 %v69, %v68
    %v71 = vld [vmem:[#allocation2] sm:$0xff]
    %v72 = vld [vmem:[#allocation2 + $0x8] sm:$0xff]
    %v73 = vld [vmem:[#allocation2 + $0x10] sm:$0xff]
    %v74 = vld [vmem:[%s2] sm:$0x3]
    %v76 = vlaneseq
    %v77 = vshrl.u32 %v76, 7
    %v78 = vsub.s32 0, %v77
    %v79 = vrot.slane %v74, %v78
    %v80 = vlaneseq
    %v81 = vshrl.u32 %v80, 7
    %v82 = vsub.s32 1, %v81
    %v83 = vrot.slane %v74, %v82
    %v89 = vunpack.c.l.b16 %v71
    %v90 = vunpack.c.h.b16 %v71
    %v91 = vunpack.c.l.b16 %v72
    %v92 = vunpack.c.h.b16 %v72
    %v93 = vunpack.c.l.b16 %v73
    %v94 = vunpack.c.h.b16 %v73
    %v95 = vpack.c.b16 %v91, %v89
    %v96 = vpack.c.b16 %v92, %v90
    %v97 = vpack.c.b16 %v93, %v93
    %v98 = vpack.c.b16 %v94, %v94
    %vm101 = vcmask 195584
    %v103 = vsel %vm101, %v70, 0
    %vm105 = vcmask 1043456
    %v107 = vsel %vm105, %v97, 0
    %v110 = vsel %vm105, %v98, 0
    %112 = vmatprep.subr.bf16.mxu0 %v96
    %113 = vmatpush1.bf16.msra.mxu0 %v95
    %114 = vmatprep.subr.bf16.mxu0 %v110
    %115 = vmatpush1.bf16.msra.mxu0 %v107
    %116 = vmatprep.subr.bf16.mxu0 0
    %117 = vmatpush1.bf16.msra.mxu0 0
    %118 = vmatprep.subr.bf16.mxu0 0
    %119 = vmatpush1.bf16.msra.mxu0 0
    %120 = vmatprep.subr.bf16.mxu0 0
    %121 = vmatpush1.bf16.msra.mxu0 0
    %122 = vmatprep.subr.bf16.mxu0 0
    %123 = vmatpush1.bf16.msra.mxu0 0
    %124 = vmatprep.subr.bf16.mxu0 0
    %125 = vmatpush1.bf16.msra.mxu0 0
    %126 = vmatprep.subr.bf16.mxu0 0
    %127 = vmatpush1.bf16.msra.mxu0 0
    %128 = vmatprep.subr.bf16.mxu0 0
    %129 = vmatpush1.bf16.msra.mxu0 0
    %130 = vmatprep.subr.bf16.mxu0 0
    %131 = vmatpush1.bf16.msra.mxu0 0
    %132 = vmatprep.subr.bf16.mxu0 0
    %133 = vmatpush1.bf16.msra.mxu0 0
    %134 = vmatprep.subr.bf16.mxu0 0
    %135 = vmatpush1.bf16.msra.mxu0 0
    %136 = vmatprep.subr.bf16.mxu0 0
    %137 = vmatpush1.bf16.msra.mxu0 0
    %138 = vmatprep.subr.bf16.mxu0 0
    %139 = vmatpush1.bf16.msra.mxu0 0
    %140 = vmatprep.subr.bf16.mxu0 0
    %141 = vmatpush1.bf16.msra.mxu0 0
    %142 = vmatprep.subr.bf16.mxu0 0
    %143 = vmatpush1.bf16.msra.mxu0 0
    %144 = vmatprep.mubr.bf16.mxu0 0
    %145 = vmatmul.mubr.bf16.gmra.mrb[0].mxu0 %v103
    %v146 = vpop.f32.mrb[0].mxu0
    %v147 = vadd.f32 %v79, %v146
    %v148 = vpop.f32.mrb[0].mxu0
    %v149 = vadd.f32 %v83, %v148
    %v150 = vpop.f32.mrb[0].mxu0
    %v151 = vadd.f32 %v79, %v150
    %v152 = vpop.f32.mrb[0].mxu0
    %v153 = vadd.f32 %v83, %v152
    %154 = vdwg.mxu0
    %v155 = vmax.f32 %v147, 0.0
    %v156 = vmax.f32 %v149, 0.0
    %v157 = vmax.f32 %v151, 0.0
    %v158 = vmax.f32 %v153, 0.0
    %v159 = vpack.c.bf16 %v157, %v155
    %v160 = vpack.c.bf16 %v158, %v156
    %v161 = vld [vmem:[#allocation4] sm:$0xff]
    %v162 = vld [vmem:[#allocation4 + $0x8] sm:$0xff]
    %v163 = vld [vmem:[#allocation4 + $0x10] sm:$0xff]
    %v164 = vld [vmem:[#allocation4 + $0x18] sm:$0xff]
    %v165 = vld [vmem:[#allocation4 + $0x20] sm:$0xff]
    %v166 = vld [vmem:[#allocation4 + $0x28] sm:$0xff]
    %v167 = vld [vmem:[#allocation4 + $0x30] sm:$0xff]
    %v168 = vld [vmem:[#allocation4 + $0x38] sm:$0xff]
    %v169 = vld [vmem:[#allocation4 + $0x40] sm:$0xff]
    %v170 = vld [vmem:[#allocation4 + $0x48] sm:$0xff]
    %v171 = vld [vmem:[#allocation4 + $0x50] sm:$0xff]
    %v172 = vld [vmem:[#allocation4 + $0x58] sm:$0xff]
    %v173 = vld [vmem:[#allocation4 + $0x60] sm:$0xff]
    %v174 = vld [vmem:[#allocation4 + $0x68] sm:$0xff]
    %v175 = vld [vmem:[#allocation4 + $0x70] sm:$0xff]
    %v176 = vld [vmem:[#allocation4 + $0x78] sm:$0xff]
    %v177 = vld [vmem:[#allocation4 + $0x80] sm:$0xff]
    %v178 = vld [vmem:[#allocation4 + $0x88] sm:$0xff]
    %v179 = vld [vmem:[#allocation4 + $0x90] sm:$0xff]
    %v180 = vld [vmem:[#allocation4 + $0x98] sm:$0xff]
    %v181 = vld [vmem:[#allocation4 + $0xa0] sm:$0xff]
    %v182 = vld [vmem:[#allocation4 + $0xa8] sm:$0xff]
    %v183 = vld [vmem:[#allocation4 + $0xb0] sm:$0xff]
    %v184 = vld [vmem:[#allocation4 + $0xb8] sm:$0xff]
    %v185 = vld [vmem:[#allocation4 + $0xc0] sm:$0xff]
    %v186 = vld [vmem:[#allocation4 + $0xc8] sm:$0xff]
    %v187 = vld [vmem:[#allocation4 + $0xd0] sm:$0xff]
    %v188 = vld [vmem:[#allocation4 + $0xd8] sm:$0xff]
    %v189 = vld [vmem:[#allocation4 + $0xe0] sm:$0xff]
    %v190 = vld [vmem:[#allocation4 + $0xe8] sm:$0xff]
    %v191 = vld [vmem:[#allocation4 + $0xf0] sm:$0xff]
    %v192 = vld [vmem:[#allocation4 + $0xf8] sm:$0xff]
    %v193 = vld [vmem:[%s4] sm:$0x3]
    %v195 = vlaneseq
    %v196 = vshrl.u32 %v195, 7
    %v197 = vsub.s32 0, %v196
    %v198 = vrot.slane %v193, %v197
    %v199 = vlaneseq
    %v200 = vshrl.u32 %v199, 7
    %v201 = vsub.s32 1, %v200
    %v202 = vrot.slane %v193, %v201
    %v237 = vunpack.c.l.b16 %v161
    %v238 = vunpack.c.h.b16 %v161
    %v239 = vunpack.c.l.b16 %v162
    %v240 = vunpack.c.h.b16 %v162
    %v241 = vunpack.c.l.b16 %v163
    %v242 = vunpack.c.h.b16 %v163
    %v243 = vunpack.c.l.b16 %v164
    %v244 = vunpack.c.h.b16 %v164
    %v245 = vunpack.c.l.b16 %v165
    %v246 = vunpack.c.h.b16 %v165
    %v247 = vunpack.c.l.b16 %v166
    %v248 = vunpack.c.h.b16 %v166
    %v249 = vunpack.c.l.b16 %v167
    %v250 = vunpack.c.h.b16 %v167
    %v251 = vunpack.c.l.b16 %v168
    %v252 = vunpack.c.h.b16 %v168
    %v253 = vunpack.c.l.b16 %v169
    %v254 = vunpack.c.h.b16 %v169
    %v255 = vunpack.c.l.b16 %v170
    %v256 = vunpack.c.h.b16 %v170
    %v257 = vunpack.c.l.b16 %v171
    %v258 = vunpack.c.h.b16 %v171
    %v259 = vunpack.c.l.b16 %v172
    %v260 = vunpack.c.h.b16 %v172
    %v261 = vunpack.c.l.b16 %v173
    %v262 = vunpack.c.h.b16 %v173
    %v263 = vunpack.c.l.b16 %v174
    %v264 = vunpack.c.h.b16 %v174
    %v265 = vunpack.c.l.b16 %v175
    %v266 = vunpack.c.h.b16 %v175
    %v267 = vunpack.c.l.b16 %v176
    %v268 = vunpack.c.h.b16 %v176
    %v269 = vunpack.c.l.b16 %v177
    %v270 = vunpack.c.h.b16 %v177
    %v271 = vunpack.c.l.b16 %v178
    %v272 = vunpack.c.h.b16 %v178
    %v273 = vunpack.c.l.b16 %v179
    %v274 = vunpack.c.h.b16 %v179
    %v275 = vunpack.c.l.b16 %v180
    %v276 = vunpack.c.h.b16 %v180
    %v277 = vunpack.c.l.b16 %v181
    %v278 = vunpack.c.h.b16 %v181
    %v279 = vunpack.c.l.b16 %v182
    %v280 = vunpack.c.h.b16 %v182
    %v281 = vunpack.c.l.b16 %v183
    %v282 = vunpack.c.h.b16 %v183
    %v283 = vunpack.c.l.b16 %v184
    %v284 = vunpack.c.h.b16 %v184
    %v285 = vunpack.c.l.b16 %v185
    %v286 = vunpack.c.h.b16 %v185
    %v287 = vunpack.c.l.b16 %v186
    %v288 = vunpack.c.h.b16 %v186
    %v289 = vunpack.c.l.b16 %v187
    %v290 = vunpack.c.h.b16 %v187
    %v291 = vunpack.c.l.b16 %v188
    %v292 = vunpack.c.h.b16 %v188
    %v293 = vunpack.c.l.b16 %v189
    %v294 = vunpack.c.h.b16 %v189
    %v295 = vunpack.c.l.b16 %v190
    %v296 = vunpack.c.h.b16 %v190
    %v297 = vunpack.c.l.b16 %v191
    %v298 = vunpack.c.h.b16 %v191
    %v299 = vunpack.c.l.b16 %v192
    %v300 = vunpack.c.h.b16 %v192
    %v301 = vpack.c.b16 %v239, %v237
    %v302 = vpack.c.b16 %v240, %v238
    %v303 = vpack.c.b16 %v243, %v241
    %v304 = vpack.c.b16 %v244, %v242
    %v305 = vpack.c.b16 %v247, %v245
    %v306 = vpack.c.b16 %v248, %v246
    %v307 = vpack.c.b16 %v251, %v249
    %v308 = vpack.c.b16 %v252, %v250
    %v309 = vpack.c.b16 %v255, %v253
    %v310 = vpack.c.b16 %v256, %v254
    %v311 = vpack.c.b16 %v259, %v257
    %v312 = vpack.c.b16 %v260, %v258
    %v313 = vpack.c.b16 %v263, %v261
    %v314 = vpack.c.b16 %v264, %v262
    %v315 = vpack.c.b16 %v267, %v265
    %v316 = vpack.c.b16 %v268, %v266
    %v317 = vpack.c.b16 %v271, %v269
    %v318 = vpack.c.b16 %v272, %v270
    %v319 = vpack.c.b16 %v275, %v273
    %v320 = vpack.c.b16 %v276, %v274
    %v321 = vpack.c.b16 %v279, %v277
    %v322 = vpack.c.b16 %v280, %v278
    %v323 = vpack.c.b16 %v283, %v281
    %v324 = vpack.c.b16 %v284, %v282
    %v325 = vpack.c.b16 %v287, %v285
    %v326 = vpack.c.b16 %v288, %v286
    %v327 = vpack.c.b16 %v291, %v289
    %v328 = vpack.c.b16 %v292, %v290
    %v329 = vpack.c.b16 %v295, %v293
    %v330 = vpack.c.b16 %v296, %v294
    %v331 = vpack.c.b16 %v299, %v297
    %v332 = vpack.c.b16 %v300, %v298
    %365 = vmatprep.subr.bf16.mxu0 %v302
    %366 = vmatpush1.bf16.msra.mxu0 %v301
    %367 = vmatprep.subr.bf16.mxu0 %v304
    %368 = vmatpush1.bf16.msra.mxu0 %v303
    %369 = vmatprep.subr.bf16.mxu0 %v306
    %370 = vmatpush1.bf16.msra.mxu0 %v305
    %371 = vmatprep.subr.bf16.mxu0 %v308
    %372 = vmatpush1.bf16.msra.mxu0 %v307
    %373 = vmatprep.subr.bf16.mxu0 %v310
    %374 = vmatpush1.bf16.msra.mxu0 %v309
    %375 = vmatprep.subr.bf16.mxu0 %v312
    %376 = vmatpush1.bf16.msra.mxu0 %v311
    %377 = vmatprep.subr.bf16.mxu0 %v314
    %378 = vmatpush1.bf16.msra.mxu0 %v313
    %379 = vmatprep.subr.bf16.mxu0 %v316
    %380 = vmatpush1.bf16.msra.mxu0 %v315
    %381 = vmatprep.subr.bf16.mxu0 %v318
    %382 = vmatpush1.bf16.msra.mxu0 %v317
    %383 = vmatprep.subr.bf16.mxu0 %v320
    %384 = vmatpush1.bf16.msra.mxu0 %v319
    %385 = vmatprep.subr.bf16.mxu0 %v322
    %386 = vmatpush1.bf16.msra.mxu0 %v321
    %387 = vmatprep.subr.bf16.mxu0 %v324
    %388 = vmatpush1.bf16.msra.mxu0 %v323
    %389 = vmatprep.subr.bf16.mxu0 %v326
    %390 = vmatpush1.bf16.msra.mxu0 %v325
    %391 = vmatprep.subr.bf16.mxu0 %v328
    %392 = vmatpush1.bf16.msra.mxu0 %v327
    %393 = vmatprep.subr.bf16.mxu0 %v330
    %394 = vmatpush1.bf16.msra.mxu0 %v329
    %395 = vmatprep.subr.bf16.mxu0 %v332
    %396 = vmatpush1.bf16.msra.mxu0 %v331
    %397 = vmatprep.mubr.bf16.mxu0 %v160
    %398 = vmatmul.mubr.bf16.gmra.mrb[0].mxu0 %v159
    %v399 = vpop.f32.mrb[0].mxu0
    %v400 = vadd.f32 %v198, %v399
    %v401 = vpop.f32.mrb[0].mxu0
    %v402 = vadd.f32 %v202, %v401
    %v403 = vpop.f32.mrb[0].mxu0
    %v404 = vadd.f32 %v198, %v403
    %v405 = vpop.f32.mrb[0].mxu0
    %v406 = vadd.f32 %v202, %v405
    %407 = vdwg.mxu0
    %v408 = vmax.f32 %v400, 0.0
    %v409 = vmax.f32 %v402, 0.0
    %v410 = vmax.f32 %v404, 0.0
    %v411 = vmax.f32 %v406, 0.0
    %v412 = vpack.c.bf16 %v410, %v408
    %v413 = vpack.c.bf16 %v411, %v409
    %v414 = vld [vmem:[#allocation6] sm:$0xf]
    %v415 = vld [vmem:[#allocation6 + $0x4] sm:$0xf]
    %v416 = vld [vmem:[#allocation6 + $0x8] sm:$0xf]
    %v417 = vld [vmem:[#allocation6 + $0xc] sm:$0xf]
    %v418 = vld [vmem:[#allocation6 + $0x10] sm:$0xf]
    %v419 = vld [vmem:[#allocation6 + $0x14] sm:$0xf]
    %v420 = vld [vmem:[#allocation6 + $0x18] sm:$0xf]
    %v421 = vld [vmem:[#allocation6 + $0x1c] sm:$0xf]
    %v422 = vld [vmem:[#allocation6 + $0x20] sm:$0xf]
    %v423 = vld [vmem:[#allocation6 + $0x24] sm:$0xf]
    %v424 = vld [vmem:[#allocation6 + $0x28] sm:$0xf]
    %v425 = vld [vmem:[#allocation6 + $0x2c] sm:$0xf]
    %v426 = vld [vmem:[#allocation6 + $0x30] sm:$0xf]
    %v427 = vld [vmem:[#allocation6 + $0x34] sm:$0xf]
    %v428 = vld [vmem:[#allocation6 + $0x38] sm:$0xf]
    %v429 = vld [vmem:[#allocation6 + $0x3c] sm:$0xf]
    %v430 = vld [vmem:[#allocation6 + $0x40] sm:$0xf]
    %v431 = vld [vmem:[#allocation6 + $0x44] sm:$0xf]
    %v432 = vld [vmem:[#allocation6 + $0x48] sm:$0xf]
    %v433 = vld [vmem:[#allocation6 + $0x4c] sm:$0xf]
    %v434 = vld [vmem:[#allocation6 + $0x50] sm:$0xf]
    %v435 = vld [vmem:[#allocation6 + $0x54] sm:$0xf]
    %v436 = vld [vmem:[#allocation6 + $0x58] sm:$0xf]
    %v437 = vld [vmem:[#allocation6 + $0x5c] sm:$0xf]
    %v438 = vld [vmem:[#allocation6 + $0x60] sm:$0xf]
    %v439 = vld [vmem:[#allocation6 + $0x64] sm:$0xf]
    %v440 = vld [vmem:[#allocation6 + $0x68] sm:$0xf]
    %v441 = vld [vmem:[#allocation6 + $0x6c] sm:$0xf]
    %v442 = vld [vmem:[#allocation6 + $0x70] sm:$0xf]
    %v443 = vld [vmem:[#allocation6 + $0x74] sm:$0xf]
    %v444 = vld [vmem:[#allocation6 + $0x78] sm:$0xf]
    %v445 = vld [vmem:[#allocation6 + $0x7c] sm:$0xf]
    %v446 = vld [vmem:[%s6] sm:$0x1]
    %v448 = vlaneseq
    %v449 = vshrl.u32 %v448, 7
    %v450 = vsub.s32 0, %v449
    %v451 = vrot.slane %v446, %v450
    %v485 = vunpack.c.l.b16 %v414
    %v486 = vunpack.c.l.b16 %v415
    %v487 = vunpack.c.l.b16 %v416
    %v488 = vunpack.c.l.b16 %v417
    %v489 = vunpack.c.l.b16 %v418
    %v490 = vunpack.c.l.b16 %v419
    %v491 = vunpack.c.l.b16 %v420
    %v492 = vunpack.c.l.b16 %v421
    %v493 = vunpack.c.l.b16 %v422
    %v494 = vunpack.c.l.b16 %v423
    %v495 = vunpack.c.l.b16 %v424
    %v496 = vunpack.c.l.b16 %v425
    %v497 = vunpack.c.l.b16 %v426
    %v498 = vunpack.c.l.b16 %v427
    %v499 = vunpack.c.l.b16 %v428
    %v500 = vunpack.c.l.b16 %v429
    %v501 = vunpack.c.l.b16 %v430
    %v502 = vunpack.c.l.b16 %v431
    %v503 = vunpack.c.l.b16 %v432
    %v504 = vunpack.c.l.b16 %v433
    %v505 = vunpack.c.l.b16 %v434
    %v506 = vunpack.c.l.b16 %v435
    %v507 = vunpack.c.l.b16 %v436
    %v508 = vunpack.c.l.b16 %v437
    %v509 = vunpack.c.l.b16 %v438
    %v510 = vunpack.c.l.b16 %v439
    %v511 = vunpack.c.l.b16 %v440
    %v512 = vunpack.c.l.b16 %v441
    %v513 = vunpack.c.l.b16 %v442
    %v514 = vunpack.c.l.b16 %v443
    %v515 = vunpack.c.l.b16 %v444
    %v516 = vunpack.c.l.b16 %v445
    %v517 = vpack.c.b16 %v486, %v485
    %v518 = vpack.c.b16 %v488, %v487
    %v519 = vpack.c.b16 %v490, %v489
    %v520 = vpack.c.b16 %v492, %v491
    %v521 = vpack.c.b16 %v494, %v493
    %v522 = vpack.c.b16 %v496, %v495
    %v523 = vpack.c.b16 %v498, %v497
    %v524 = vpack.c.b16 %v500, %v499
    %v525 = vpack.c.b16 %v502, %v501
    %v526 = vpack.c.b16 %v504, %v503
    %v527 = vpack.c.b16 %v506, %v505
    %v528 = vpack.c.b16 %v508, %v507
    %v529 = vpack.c.b16 %v510, %v509
    %v530 = vpack.c.b16 %v512, %v511
    %v531 = vpack.c.b16 %v514, %v513
    %v532 = vpack.c.b16 %v516, %v515
    %549 = vmatprep.subr.bf16.mxu0 0
    %550 = vmatpush1.bf16.msra.mxu0 %v517
    %551 = vmatprep.subr.bf16.mxu0 0
    %552 = vmatpush1.bf16.msra.mxu0 %v518
    %553 = vmatprep.subr.bf16.mxu0 0
    %554 = vmatpush1.bf16.msra.mxu0 %v519
    %555 = vmatprep.subr.bf16.mxu0 0
    %556 = vmatpush1.bf16.msra.mxu0 %v520
    %557 = vmatprep.subr.bf16.mxu0 0
    %558 = vmatpush1.bf16.msra.mxu0 %v521
    %559 = vmatprep.subr.bf16.mxu0 0
    %560 = vmatpush1.bf16.msra.mxu0 %v522
    %561 = vmatprep.subr.bf16.mxu0 0
    %562 = vmatpush1.bf16.msra.mxu0 %v523
    %563 = vmatprep.subr.bf16.mxu0 0
    %564 = vmatpush1.bf16.msra.mxu0 %v524
    %565 = vmatprep.subr.bf16.mxu0 0
    %566 = vmatpush1.bf16.msra.mxu0 %v525
    %567 = vmatprep.subr.bf16.mxu0 0
    %568 = vmatpush1.bf16.msra.mxu0 %v526
    %569 = vmatprep.subr.bf16.mxu0 0
    %570 = vmatpush1.bf16.msra.mxu0 %v527
    %571 = vmatprep.subr.bf16.mxu0 0
    %572 = vmatpush1.bf16.msra.mxu0 %v528
    %573 = vmatprep.subr.bf16.mxu0 0
    %574 = vmatpush1.bf16.msra.mxu0 %v529
    %575 = vmatprep.subr.bf16.mxu0 0
    %576 = vmatpush1.bf16.msra.mxu0 %v530
    %577 = vmatprep.subr.bf16.mxu0 0
    %578 = vmatpush1.bf16.msra.mxu0 %v531
    %579 = vmatprep.subr.bf16.mxu0 0
    %580 = vmatpush1.bf16.msra.mxu0 %v532
    %581 = vmatprep.mubr.bf16.mxu0 %v413
    %582 = vmatmul.mubr.bf16.gmra.mrb[0].mxu0 %v412
    %v583 = vpop.f32.mrb[0].mxu0
    %v584 = vadd.f32 %v451, %v583
    %v585 = vpop.f32.mrb[0].mxu0
    %v586 = vpop.f32.mrb[0].mxu0
    %v587 = vadd.f32 %v451, %v586
    %v588 = vpop.f32.mrb[0].mxu0
    %589 = vdwg.mxu0
    %v590 = vtanh.pop %v584
    %v591 = vtanh.pop %v587
    %v592 = vpack.c.bf16 %v591, %v590
    %v594 = vunpack.c.l.b16 %v592
    %v595 = vunpack.c.h.b16 %v592
    %v596 = vpack.c.b16 %v594, %v594
    %v597 = vpack.c.b16 %v595, %v595
    %600 = vst [vmem:[%s7] sm:$0xf] %v596
    %601 = vst [vmem:[%s7 + $0x4] sm:$0xf] %v597
    // Predicated region
    $region42: #{munet1_forward.1} parent=1 // pred_check
      _
    $region43: #{munet1_forward.1} parent=1 // pred_check_branch
      %603 = sbr.rel (0) target = $region45
    $region44: #{munet1_forward.1} parent=1 // pred_region
      _
    $region45: #{munet1_forward.1} parent=1 // pred_fallthru
      _
    // Predicated region
    $region46: #{munet1_forward.1} parent=1 // pred_check
      _
    $region47: #{munet1_forward.1} parent=1 // pred_check_branch
      %605 = sbr.rel (0) target = $region49
    $region48: #{munet1_forward.1} parent=1 // pred_region
      _
    $region49: #{munet1_forward.1} parent=1 // pred_fallthru
      _
    %606 = vsyncpa [#allocation3], 1
    %607 = vsyncpa [#allocation5], 1

</llo_original>
